<compile_context>
chip_gen: v5e
topology: v5e:2x2
jax: 0.10.0
libtpu: 0.0.40
codegen_flags: <defaults>
</compile_context>

<pallas_src>
import functools

import jax
import jax.numpy as jnp
from jax.experimental import pallas as pl
from jax.experimental.pallas import tpu as pltpu


def _sample_model_kernel(a_ref, b_ref, w_ref, o_ref, *, fold_transpose):
    # Blocks arrive in the original (rows, tile_c) layout; the softmax reduction runs
    # over the ROW axis, which equals dim=-1 of y.T (elementwise ops commute with .T).
    y = a_ref[...] * 2.0 + b_ref[...] + w_ref[...]          # VPU adds, in-kernel
    m = jnp.max(y, axis=0, keepdims=True)                   # numerically stable softmax
    e = jnp.exp(y - m)
    s = jnp.sum(e, axis=0, keepdims=True)
    z_t = e / s                                             # exact normalize (torch parity)
    if fold_transpose:
        o_ref[...] = z_t.T        # lane-dense store only when rows % 128 == 0
    else:
        o_ref[...] = z_t          # keep (rows, tile_c) lane-dense; transpose outside


def _vmem_budget_bytes():
    """Per-generation budget for the 4 double-buffered f32 streams (a, b, w, out)."""
    try:
        cap = int(pltpu.get_tpu_info().vmem_capacity_bytes)
    except Exception:
        cap = 64 * 1024 * 1024          # conservative: v7x per-core physical VMEM
    # ~1/4 of physical, clamped: v5e/v6e (128 MiB) -> 28 MiB, v7x (64 MiB) -> 16 MiB.
    return max(12 * 1024 * 1024, min(28 * 1024 * 1024, cap // 4))


def _choose_tile_c(rows, cols, budget):
    """Largest column tile that is a multiple of 128, divides cols, fits the VMEM
    budget, and leaves >= 2 grid steps when possible (v7x has 2 TensorCores)."""
    if cols % 128 != 0:
        return cols                                  # single full-array block
    per_col = 4 * 2 * rows * 4                       # 4 streams x 2 buffers x f32
    tile = min(cols, max(128, (budget // per_col) // 128 * 128))
    if tile >= cols and cols >= 256:
        tile = cols // 2                             # keep >= 2 steps for megacore split
    tile = max(128, (tile // 128) * 128)
    while cols % tile != 0:                          # cols % 128 == 0, so this terminates
        tile -= 128
    return tile


def sample_model(a, b, w, *, tile_c=None, force_pallas=False):
    """JAX/Pallas equivalent of SampleModel.forward(a, b) with parameter w."""
    a = jnp.asarray(a, jnp.float32)
    b = jnp.asarray(b, jnp.float32)
    w = jnp.asarray(w, jnp.float32)
    rows, cols = a.shape

    budget = _vmem_budget_bytes()

    # Narrowest possible tile for this shape (128-wide when cols is 128-aligned,
    # otherwise one full-array block).
    if cols % 128 == 0:
        min_tile_bytes = 4 * 2 * rows * 128 * 4
    else:
        min_tile_bytes = 4 * 2 * rows * cols * 4

    tiny = a.size < 4096
    if (tiny and not force_pallas) or (min_tile_bytes > budget):
        # Tiny shapes are pure launch overhead; oversized reduction axes need row blocking.
        # TODO(synk): row-blocked two-pass / online-softmax Pallas kernel for shapes whose
        # full reduction axis does not fit VMEM; fused XLA fallback for now.
        return jax.nn.softmax((a * 2.0 + b + w).T, axis=-1)

    if tile_c is None:
        tile_c = _choose_tile_c(rows, cols, budget)
    grid = (cols // tile_c,)

    # Fold y.T into the kernel store only when the (tile_c, rows) output block is
    # lane-dense; rows < 128 would hit masked partial stores, so transpose outside instead.
    fold_transpose = (rows % 128 == 0) and (tile_c % 128 == 0)
    kernel = functools.partial(_sample_model_kernel, fold_transpose=fold_transpose)

    if fold_transpose:
        out_shape = jax.ShapeDtypeStruct((cols, rows), jnp.float32)
        out_spec = pl.BlockSpec((tile_c, rows), lambda j: (j, 0))
    else:
        out_shape = jax.ShapeDtypeStruct((rows, cols), jnp.float32)
        out_spec = pl.BlockSpec((rows, tile_c), lambda j: (0, j))

    in_spec = pl.BlockSpec((rows, tile_c), lambda j: (0, j))
    vmem_limit = max(16 * 1024 * 1024, min(32 * 1024 * 1024, 2 * budget))

    out = pl.pallas_call(
        kernel,
        out_shape=out_shape,
        grid=grid,
        in_specs=[in_spec, in_spec, in_spec],
        out_specs=out_spec,
        compiler_params=pltpu.CompilerParams(
            dimension_semantics=("parallel",),
            vmem_limit_bytes=vmem_limit,
        ),
    )(a, b, w)

    return out if fold_transpose else out.T


if __name__ == "__main__":
    key = jax.random.PRNGKey(0)
    ka, kb = jax.random.split(key)

    # Shapes implied by the module: a, b, w are all (2, 2).
    a = jax.random.normal(ka, (2, 2), dtype=jnp.float32)
    b = jax.random.normal(kb, (2, 2), dtype=jnp.float32)
    w = jnp.ones((2, 2), dtype=jnp.float32) * 0.3           # torch.ones((2, 2)) * 0.3

    z = jax.block_until_ready(sample_model(a, b, w, force_pallas=True))
    z_ref = jax.nn.softmax((a * 2.0 + b + w).T, axis=-1)
    assert z.shape == (2, 2)
    assert jnp.allclose(z, z_ref, atol=1e-4, rtol=1e-4)

    # Scaled check #1: lane-dense folded-transpose path (rows % 128 == 0), 2-step grid.
    ka2, kb2 = jax.random.split(jax.random.PRNGKey(1))
    rows, cols = 128, 256
    a2 = jax.random.normal(ka2, (rows, cols), dtype=jnp.float32)
    b2 = jax.random.normal(kb2, (rows, cols), dtype=jnp.float32)
    w2 = jnp.ones((rows, cols), dtype=jnp.float32) * 0.3
    z2 = jax.block_until_ready(sample_model(a2, b2, w2, force_pallas=True))
    z2_ref = jax.nn.softmax((a2 * 2.0 + b2 + w2).T, axis=-1)
    assert z2.shape == (cols, rows)
    assert jnp.allclose(z2, z2_ref, atol=1e-4, rtol=1e-4)

    # Scaled check #2: rows < 128 -> lane-dense un-folded store, transpose outside.
    ka3, kb3 = jax.random.split(jax.random.PRNGKey(2))
    rows, cols = 8, 256
    a3 = jax.random.normal(ka3, (rows, cols), dtype=jnp.float32)
    b3 = jax.random.normal(kb3, (rows, cols), dtype=jnp.float32)
    w3 = jnp.ones((rows, cols), dtype=jnp.float32) * 0.3
    z3 = jax.block_until_ready(sample_model(a3, b3, w3, tile_c=128, force_pallas=True))
    z3_ref = jax.nn.softmax((a3 * 2.0 + b3 + w3).T, axis=-1)
    assert z3.shape == (cols, rows)
    assert jnp.allclose(z3, z3_ref, atol=1e-4, rtol=1e-4)

    print("KERNEL_OK")
</pallas_src>

<mosaic_0001>
module attributes {stable_mosaic.version = 11 : i64} {
  func.func @_sample_model_kernel(%arg0: i32, %arg1: memref<2x2xf32, #tpu.memory_space<vmem>>, %arg2: memref<2x2xf32, #tpu.memory_space<vmem>>, %arg3: memref<2x2xf32, #tpu.memory_space<vmem>>, %arg4: memref<2x2xf32, #tpu.memory_space<vmem>>) attributes {dimension_semantics = [#tpu.dimension_semantics<parallel>], iteration_bounds = array<i64: 1>, scalar_prefetch = 0 : i64, scratch_operands = 0 : i64, tpu.core_type = #tpu.core_type<tc>, window_params = [{transform_indices = @transform_0, window_bounds = array<i64: 2, 2>}, {transform_indices = @transform_1, window_bounds = array<i64: 2, 2>}, {transform_indices = @transform_2, window_bounds = array<i64: 2, 2>}, {transform_indices = @transform_3, window_bounds = array<i64: 2, 2>}]} {
    %c0 = arith.constant 0 : index
    %c0_0 = arith.constant 0 : index
    %0 = vector.load %arg1[%c0, %c0_0] : memref<2x2xf32, #tpu.memory_space<vmem>>, vector<2x2xf32>
    %cst = arith.constant 2.000000e+00 : f32
    %1 = vector.broadcast %cst : f32 to vector<2x2xf32>
    %2 = arith.mulf %0, %1 : vector<2x2xf32>
    %c0_1 = arith.constant 0 : index
    %c0_2 = arith.constant 0 : index
    %3 = vector.load %arg2[%c0_1, %c0_2] : memref<2x2xf32, #tpu.memory_space<vmem>>, vector<2x2xf32>
    %4 = arith.addf %2, %3 : vector<2x2xf32>
    %c0_3 = arith.constant 0 : index
    %c0_4 = arith.constant 0 : index
    %5 = vector.load %arg3[%c0_3, %c0_4] : memref<2x2xf32, #tpu.memory_space<vmem>>, vector<2x2xf32>
    %6 = arith.addf %4, %5 : vector<2x2xf32>
    %cst_5 = arith.constant dense<0xFF800000> : vector<2xf32>
    %7 = vector.multi_reduction <maximumf>, %6, %cst_5 [0] : vector<2x2xf32> to vector<2xf32>
    %8 = vector.shape_cast %7 : vector<2xf32> to vector<1x2xf32>
    %9 = vector.broadcast %8 : vector<1x2xf32> to vector<2x2xf32>
    %10 = arith.subf %6, %9 : vector<2x2xf32>
    %11 = math.exp %10 : vector<2x2xf32>
    %cst_6 = arith.constant dense<0.000000e+00> : vector<2xf32>
    %12 = vector.multi_reduction <add>, %11, %cst_6 [0] : vector<2x2xf32> to vector<2xf32>
    %13 = vector.shape_cast %12 : vector<2xf32> to vector<1x2xf32>
    %14 = vector.broadcast %13 : vector<1x2xf32> to vector<2x2xf32>
    %15 = arith.divf %11, %14 : vector<2x2xf32>
    %c0_7 = arith.constant 0 : index
    %c0_8 = arith.constant 0 : index
    %16 = vector.load %arg4[%c0_7, %c0_8] : memref<2x2xf32, #tpu.memory_space<vmem>>, vector<2x2xf32>
    tpu.vector_store %arg4[%c0_7, %c0_8], %15 {strides = array<i32>} : memref<2x2xf32, #tpu.memory_space<vmem>>, vector<2x2xf32>,
    return
  }
  func.func @transform_0(%arg0: i32) -> (i32, i32) {
    %c0_i32 = arith.constant 0 : i32
    %c0_i32_0 = arith.constant 0 : i32
    return %c0_i32, %arg0 : i32, i32
  }
  func.func @transform_1(%arg0: i32) -> (i32, i32) {
    %c0_i32 = arith.constant 0 : i32
    %c0_i32_0 = arith.constant 0 : i32
    return %c0_i32, %arg0 : i32, i32
  }
  func.func @transform_2(%arg0: i32) -> (i32, i32) {
    %c0_i32 = arith.constant 0 : i32
    %c0_i32_0 = arith.constant 0 : i32
    return %c0_i32, %arg0 : i32, i32
  }
  func.func @transform_3(%arg0: i32) -> (i32, i32) {
    %c0_i32 = arith.constant 0 : i32
    %c0_i32_0 = arith.constant 0 : i32
    return %c0_i32, %arg0 : i32, i32
  }
}

</mosaic_0001>

<llo_original>
// kernel: tpu_custom_call.1
$region0: #{tpu_custom_call.1}
  #allocation0 [shape = 'u32[]', space=smem, size = 0x4, offset = 0x4, fixed_abs, tag = 'smem constant byte address 0x4 - core index']
  #allocation1 [shape = 'u32[72,128]{1,0:T(1,128)}', space=vmem, size = 0x9000, scoped, tag = 'internal scratch']
  %s0 = inlined_call_operand.hbm [shape: f32[2,2], index: 0, kind: input, shape index: {}]
  %s1 = inlined_call_operand.hbm [shape: f32[2,2], index: 1, kind: input, shape index: {}]
  %s2 = inlined_call_operand.hbm [shape: f32[2,2], index: 2, kind: input, shape index: {}]
  %s3 = inlined_call_operand.hbm [shape: f32[2,2], index: 3, kind: output, shape index: {}]
  %s4 = sld [smem:[#allocation0]]
  $region34: #{tpu_custom_call.1} parent=0
    _
  %s6 = ssub.s32 1, %s4
  %s7 = scalar_select 0, %s6, %s4
  $region1: #{tpu_custom_call.1} parent=0
    #allocation2 [shape = 'u8[1024]{0}', space=vmem, size = 0x400, scoped, tag = 'input window, operand 0, single buffered']
    #allocation3 [shape = 's32[1]{0}', space=sflag, size = 0x4, scoped, tag = 'scoped memory for tpu_custom_call.1']
    #allocation4 [shape = 's32[1]{0}', space=sflag, size = 0x4, scoped, tag = 'scoped memory for tpu_custom_call.1']
    #allocation5 [shape = 'u8[1024]{0}', space=vmem, size = 0x400, scoped, tag = 'input window, operand 1, single buffered']
    #allocation6 [shape = 's32[1]{0}', space=sflag, size = 0x4, scoped, tag = 'scoped memory for tpu_custom_call.1']
    #allocation7 [shape = 'u8[1024]{0}', space=vmem, size = 0x400, scoped, tag = 'input window, operand 2, single buffered']
    #allocation8 [shape = 'u8[1024]{0}', space=vmem, size = 0x400, scoped, tag = 'output window, operand 0, single buffered']
    %8 = vsyncpa [#allocation3], 0
    %9 = vsyncpa [#allocation6], 0
    %10 = vsyncpa [#allocation4], 0
    // Predicated region
    $region2: #{tpu_custom_call.1} parent=1 // pred_check
      _
    $region3: #{tpu_custom_call.1} parent=1 // pred_check_branch
      %12 = sbr.rel (0) target = $region5
    $region4: #{tpu_custom_call.1} parent=1 // pred_region
      %14 = vsyncadd [#allocation3], 0
      %s16 = sshll.u32 %s0, 4
      %s17 = int_to_ptr.hbm [resolvable:$true] %s16
      %s18 = sshll.u32 [#allocation2], 4
      %s19 = int_to_ptr.vmem [resolvable:$true] %s18
      %21 = dma.hbm_to_vmem [thread:$0]  %s17, 32, %s19, [#allocation3]
    $region5: #{tpu_custom_call.1} parent=1 // pred_fallthru
      _
    // Predicated region
    $region6: #{tpu_custom_call.1} parent=1 // pred_check
      _
    $region7: #{tpu_custom_call.1} parent=1 // pred_check_branch
      %23 = sbr.rel (0) target = $region9
    $region8: #{tpu_custom_call.1} parent=1 // pred_region
      %25 = vsyncadd [#allocation6], 0
      %s27 = sshll.u32 %s1, 4
      %s28 = int_to_ptr.hbm [resolvable:$true] %s27
      %s29 = sshll.u32 [#allocation5], 4
      %s30 = int_to_ptr.vmem [resolvable:$true] %s29
      %32 = dma.hbm_to_vmem [thread:$0]  %s28, 32, %s30, [#allocation6]
    $region9: #{tpu_custom_call.1} parent=1 // pred_fallthru
      _
    // Predicated region
    $region10: #{tpu_custom_call.1} parent=1 // pred_check
      _
    $region11: #{tpu_custom_call.1} parent=1 // pred_check_branch
      %34 = sbr.rel (0) target = $region13
    $region12: #{tpu_custom_call.1} parent=1 // pred_region
      %36 = vsyncadd [#allocation6], 0
      %s38 = sshll.u32 %s2, 4
      %s39 = int_to_ptr.hbm [resolvable:$true] %s38
      %s40 = sshll.u32 [#allocation7], 4
      %s41 = int_to_ptr.vmem [resolvable:$true] %s40
      %43 = dma.hbm_to_vmem [thread:$0]  %s39, 32, %s41, [#allocation6]
    $region13: #{tpu_custom_call.1} parent=1 // pred_fallthru
      _
    // Predicated region
    $region14: #{tpu_custom_call.1} parent=1 // pred_check
      _
    $region15: #{tpu_custom_call.1} parent=1 // pred_check_branch
      %45 = sbr.rel (0) target = $region17
    $region16: #{tpu_custom_call.1} parent=1 // pred_region
      %47 = dma.done [#allocation3], 32
    $region17: #{tpu_custom_call.1} parent=1 // pred_fallthru
      _
    // Predicated region
    $region18: #{tpu_custom_call.1} parent=1 // pred_check
      _
    $region19: #{tpu_custom_call.1} parent=1 // pred_check_branch
      %49 = sbr.rel (0) target = $region21
    $region20: #{tpu_custom_call.1} parent=1 // pred_region
      %51 = dma.done [#allocation6], 32
    $region21: #{tpu_custom_call.1} parent=1 // pred_fallthru
      _
    // Predicated region
    $region22: #{tpu_custom_call.1} parent=1 // pred_check
      _
    $region23: #{tpu_custom_call.1} parent=1 // pred_check_branch
      %53 = sbr.rel (0) target = $region25
    $region24: #{tpu_custom_call.1} parent=1 // pred_region
      %55 = dma.done [#allocation6], 32
    $region25: #{tpu_custom_call.1} parent=1 // pred_fallthru
      _
    %v56 = vld [vmem:[#allocation2] sm:$0x3]
    %v57 = vmul.f32 %v56, 2.0
    %v58 = vld [vmem:[#allocation5] sm:$0x3]
    %v59 = vadd.f32 %v57, %v58
    %v60 = vld [vmem:[#allocation7] sm:$0x3]
    %v61 = vadd.f32 %v59, %v60
    %vm62 = vcmask 9216
    %v63 = vsel %vm62, %v61, -inf
    %v64 = vrot.slane %v63, 4
    %v65 = vmax.f32 %v63, %v64
    %v66 = vrot.slane %v65, 2
    %v67 = vmax.f32 %v65, %v66
    %v68 = vrot.slane %v67, 1
    %v69 = vmax.f32 %v67, %v68
    %v70 = vsub.f32 %v61, %v69
    %v71 = vmul.f32 %v70, 1.442695
    %v72 = vpow.pop %v71
    %v73 = vsel %vm62, %v72, 0.0
    %v74 = vrot.slane %v73, 4
    %v75 = vadd.f32 %v73, %v74
    %v76 = vrot.slane %v75, 2
    %v77 = vadd.f32 %v75, %v76
    %v78 = vrot.slane %v77, 1
    %v79 = vadd.f32 %v77, %v78
    %v80 = vrcp.pop %v79
    %v81 = vmul.f32 %v79, %v80
    %v82 = vsub.f32 1.0, %v81
    %v83 = vmul.f32 %v80, %v82
    %v84 = vadd.f32 %v80, %v83
    %vm85 = vweird.f32 %v79
    %vm86 = vweird.f32 %v80
    %vm87 = vmor %vm85, %vm86
    %v88 = vsel %vm87, %v80, %v84
    %v89 = vand.u32 2147483647, %v79
    %vm90 = vcmp.eq.f32.partialorder %v89, 8.507059e+37
    %v91 = vand.u32 %v79, 2147483648
    %v92 = vor.u32 1.1754944e-38, %v91
    %v93 = vsel %vm90, %v92, %v88
    %v94 = vmul.f32 %v72, %v93
    %95 = vst.msk [vmem:[#allocation8] sm:$0x3] %vm62, %v94
    // Predicated region
    $region26: #{tpu_custom_call.1} parent=1 // pred_check
      _
    $region27: #{tpu_custom_call.1} parent=1 // pred_check_branch
      %97 = sbr.rel (0) target = $region29
    $region28: #{tpu_custom_call.1} parent=1 // pred_region
      %99 = vsyncadd [#allocation4], 0
      %s101 = sshll.u32 [#allocation8], 4
      %s102 = int_to_ptr.vmem [resolvable:$true] %s101
      %s103 = sshll.u32 %s3, 4
      %s104 = int_to_ptr.hbm [resolvable:$true] %s103
      %106 = dma.vmem_to_hbm [thread:$0]  %s102, 32, %s104, [#allocation4]
    $region29: #{tpu_custom_call.1} parent=1 // pred_fallthru
      _
    // Predicated region
    $region30: #{tpu_custom_call.1} parent=1 // pred_check
      _
    $region31: #{tpu_custom_call.1} parent=1 // pred_check_branch
      %108 = sbr.rel (0) target = $region33
    $region32: #{tpu_custom_call.1} parent=1 // pred_region
      %110 = dma.done [#allocation4], 32
    $region33: #{tpu_custom_call.1} parent=1 // pred_fallthru
      _
    %111 = vsyncpa [#allocation3], 1
    %112 = vsyncpa [#allocation6], 1
    %113 = vsyncpa [#allocation4], 1

</llo_original>
